<compile_context>
chip_gen: v6e
topology: v6e:2x2x1
jax: 0.10.0
libtpu: 0.0.40
codegen_flags: <defaults>
</compile_context>

<pallas_src>
import functools

import jax
import jax.numpy as jnp
from jax.experimental import pallas as pl
from jax.experimental.pallas import tpu as pltpu


def _round_up(x, m):
    return ((x + m - 1) // m) * m


def _critic_kernel(s_ref, a_ref, w1s_ref, w1a_ref, b1_ref, w2_ref, b2_ref,
                   w3_ref, b3_ref, o_ref, *, matmul_dtype):
    # Layer 1: fused concat -> state @ W1_s + action @ W1_a + b1, ReLU in f32.
    h1 = (jnp.dot(s_ref[...], w1s_ref[...], preferred_element_type=jnp.float32)
          + jnp.dot(a_ref[...], w1a_ref[...], preferred_element_type=jnp.float32)
          + b1_ref[...])
    h1 = jnp.maximum(h1, 0.0)
    # Layer 2.
    h2 = jnp.dot(h1.astype(matmul_dtype), w2_ref[...],
                 preferred_element_type=jnp.float32) + b2_ref[...]
    h2 = jnp.maximum(h2, 0.0)
    # Layer 3 (no activation).
    o = jnp.dot(h2.astype(matmul_dtype), w3_ref[...],
                preferred_element_type=jnp.float32) + b3_ref[...]
    o_ref[...] = o.astype(o_ref.dtype)


def critic_forward(state, action, params, *, block_batch=256,
                   matmul_dtype=jnp.float32):
    """Critic MLP forward: l3(relu(l2(relu(l1(cat(s, a)))))) in one pallas_call."""
    w1, b1, w2, b2, w3, b3 = params
    batch, state_dim = state.shape
    action_dim = action.shape[1]
    hidden = w1.shape[1]
    out_size = w3.shape[1]

    # Split W1 so the concat never materializes (layer 1 becomes two matmuls).
    w1_s = w1[:state_dim, :]
    w1_a = w1[state_dim:, :]

    # Optional low-precision matmul operands; biases / accumulation stay f32.
    s_c = state.astype(matmul_dtype)
    a_c = action.astype(matmul_dtype)
    w1_s, w1_a, w2_c, w3_c = (w.astype(matmul_dtype)
                              for w in (w1_s, w1_a, w2, w3))

    # Batch tiling. Row alignment follows the native sublane tile for the
    # matmul dtype (8 rows for f32, 16 for bf16). Pad batch to a tile multiple.
    itemsize = jnp.dtype(matmul_dtype).itemsize
    row_align = max(8, 32 // itemsize)
    tb = min(block_batch, _round_up(batch, row_align))
    tb = _round_up(tb, row_align)
    b_pad = _round_up(batch, tb)
    if b_pad != batch:
        pad = b_pad - batch
        s_c = jnp.pad(s_c, ((0, pad), (0, 0)))
        a_c = jnp.pad(a_c, ((0, pad), (0, 0)))
    grid = (pl.cdiv(b_pad, tb),)

    def act_spec(feat):
        return pl.BlockSpec((tb, feat), lambda i: (i, 0))

    def res_spec(shape):
        # Constant index_map -> block stays VMEM-resident across the grid.
        return pl.BlockSpec(shape, lambda i: (0, 0))

    # VMEM budget: double-buffered activation tiles + resident weights + live
    # f32 intermediates, 2x headroom, capped comfortably under v7x's 64 MiB.
    act_tile_bytes = 2 * tb * (state_dim + action_dim) * itemsize \
        + 2 * tb * out_size * 4
    wt_bytes = ((state_dim + action_dim) * hidden + hidden * hidden
                + hidden * out_size) * itemsize + (2 * hidden + out_size) * 4
    live_bytes = 2 * tb * hidden * 4
    vmem_limit = int(min(max(2 * (act_tile_bytes + wt_bytes + live_bytes),
                             16 << 20), 48 << 20))

    cost = pl.CostEstimate(
        flops=2 * b_pad * ((state_dim + action_dim) * hidden
                           + hidden * hidden + hidden * out_size),
        transcendentals=0,
        bytes_accessed=(b_pad * (state_dim + action_dim) * itemsize
                        + wt_bytes + b_pad * out_size * 4),
    )

    out = pl.pallas_call(
        functools.partial(_critic_kernel, matmul_dtype=matmul_dtype),
        out_shape=jax.ShapeDtypeStruct((b_pad, out_size), jnp.float32),
        grid=grid,
        in_specs=[
            act_spec(state_dim),              # state tile (streamed)
            act_spec(action_dim),             # action tile (streamed)
            res_spec((state_dim, hidden)),    # W1_s  (resident)
            res_spec((action_dim, hidden)),   # W1_a  (resident)
            res_spec((1, hidden)),            # b1
            res_spec((hidden, hidden)),       # W2
            res_spec((1, hidden)),            # b2
            res_spec((hidden, out_size)),     # W3
            res_spec((1, out_size)),          # b3
        ],
        out_specs=pl.BlockSpec((tb, out_size), lambda i: (i, 0)),
        compiler_params=pltpu.CompilerParams(
            dimension_semantics=("parallel",),
            vmem_limit_bytes=vmem_limit,
        ),
        cost_estimate=cost,
    )(s_c, a_c, w1_s, w1_a, b1, w2_c, b2, w3_c, b3)

    return out[:batch]


def init_critic_params(key, input_size, hidden_size, output_size):
    """Mimics nn.Linear's uniform(-1/sqrt(fan_in), 1/sqrt(fan_in)) init.

    Weights are stored as (in_features, out_features); biases as
    (1, out_features) so they broadcast against the (batch, out) matmul result.
    """
    ks = jax.random.split(key, 6)

    def linear(kw, kb, fan_in, fan_out):
        bound = 1.0 / jnp.sqrt(jnp.float32(fan_in))
        w = jax.random.uniform(kw, (fan_in, fan_out), jnp.float32, -bound, bound)
        b = jax.random.uniform(kb, (1, fan_out), jnp.float32, -bound, bound)
        return w, b

    w1, b1 = linear(ks[0], ks[1], input_size, hidden_size)
    w2, b2 = linear(ks[2], ks[3], hidden_size, hidden_size)
    w3, b3 = linear(ks[4], ks[5], hidden_size, output_size)
    return (w1, b1, w2, b2, w3, b3)


def critic_reference(state, action, params):
    """Plain-JAX reference for correctness checking."""
    w1, b1, w2, b2, w3, b3 = params
    x = jnp.concatenate([state, action], axis=1)
    x = jnp.maximum(x @ w1 + b1, 0.0)
    x = jnp.maximum(x @ w2 + b2, 0.0)
    return x @ w3 + b3


if __name__ == "__main__":
    # Small shapes consistent with the module: Critic(input_size, hidden, output).
    # batch=20 with block_batch=8 exercises multiple batch tiles + a padded
    # remainder tile while staying tiny.
    batch = 20
    state_dim = 24
    action_dim = 8
    input_size = state_dim + action_dim   # 32
    hidden_size = 32
    output_size = 1

    key = jax.random.PRNGKey(0)
    k_state, k_action, k_params = jax.random.split(key, 3)

    state = jax.random.normal(k_state, (batch, state_dim), jnp.float32)
    action = jax.random.normal(k_action, (batch, action_dim), jnp.float32)
    params = init_critic_params(k_params, input_size, hidden_size, output_size)

    ref = critic_reference(state, action, params)

    # f32 path (default): tight tolerance.
    out = critic_forward(state, action, params, block_batch=8)
    out = jax.block_until_ready(out)
    assert out.shape == (batch, output_size)
    assert jnp.allclose(out, ref, atol=1e-5, rtol=1e-5)

    # bf16-matmul path (v6e/v7x MXU fast path): f32 accumulate, looser tolerance.
    out_bf16 = critic_forward(state, action, params, block_batch=8,
                              matmul_dtype=jnp.bfloat16)
    out_bf16 = jax.block_until_ready(out_bf16)
    assert jnp.allclose(out_bf16, ref, atol=5e-2, rtol=5e-2)

    print("KERNEL_OK")
</pallas_src>

<mosaic_0001>
module attributes {stable_mosaic.version = 11 : i64} {
  func.func @_critic_kernel(%arg0: i32, %arg1: memref<8x24xf32, #tpu.memory_space<vmem>>, %arg2: memref<8x8xf32, #tpu.memory_space<vmem>>, %arg3: memref<24x32xf32, #tpu.memory_space<vmem>>, %arg4: memref<8x32xf32, #tpu.memory_space<vmem>>, %arg5: memref<1x32xf32, #tpu.memory_space<vmem>>, %arg6: memref<32x32xf32, #tpu.memory_space<vmem>>, %arg7: memref<1x32xf32, #tpu.memory_space<vmem>>, %arg8: memref<32x1xf32, #tpu.memory_space<vmem>>, %arg9: memref<1x1xf32, #tpu.memory_space<vmem>>, %arg10: memref<8x1xf32, #tpu.memory_space<vmem>>) attributes {dimension_semantics = [#tpu.dimension_semantics<parallel>], iteration_bounds = array<i64: 3>, scalar_prefetch = 0 : i64, scratch_operands = 0 : i64, tpu.core_type = #tpu.core_type<tc>, window_params = [{transform_indices = @transform_0, window_bounds = array<i64: 8, 24>}, {transform_indices = @transform_1, window_bounds = array<i64: 8, 8>}, {pipeline_mode = #tpu.pipeline_mode<synchronous>, transform_indices = @transform_2, window_bounds = array<i64: 24, 32>}, {pipeline_mode = #tpu.pipeline_mode<synchronous>, transform_indices = @transform_3, window_bounds = array<i64: 8, 32>}, {pipeline_mode = #tpu.pipeline_mode<synchronous>, transform_indices = @transform_4, window_bounds = array<i64: 1, 32>}, {pipeline_mode = #tpu.pipeline_mode<synchronous>, transform_indices = @transform_5, window_bounds = array<i64: 32, 32>}, {pipeline_mode = #tpu.pipeline_mode<synchronous>, transform_indices = @transform_6, window_bounds = array<i64: 1, 32>}, {pipeline_mode = #tpu.pipeline_mode<synchronous>, transform_indices = @transform_7, window_bounds = array<i64: 32, 1>}, {pipeline_mode = #tpu.pipeline_mode<synchronous>, transform_indices = @transform_8, window_bounds = array<i64: 1, 1>}, {transform_indices = @transform_9, window_bounds = array<i64: 8, 1>}]} {
    %c0 = arith.constant 0 : index
    %c0_0 = arith.constant 0 : index
    %0 = vector.load %arg1[%c0, %c0_0] : memref<8x24xf32, #tpu.memory_space<vmem>>, vector<8x24xf32>
    %c0_1 = arith.constant 0 : index
    %c0_2 = arith.constant 0 : index
    %1 = vector.load %arg3[%c0_1, %c0_2] : memref<24x32xf32, #tpu.memory_space<vmem>>, vector<24x32xf32>
    %cst = arith.constant dense<0.000000e+00> : vector<8x32xf32>
    %2 = tpu.matmul %0, %1, %cst {dimension_numbers = #tpu.dot_dimension_numbers<[1], [0], [0], [1], [0, 0, 1, 1], [], []>} : vector<8x24xf32>, vector<24x32xf32>, vector<8x32xf32> -> vector<8x32xf32>
    %c0_3 = arith.constant 0 : index
    %c0_4 = arith.constant 0 : index
    %3 = vector.load %arg2[%c0_3, %c0_4] : memref<8x8xf32, #tpu.memory_space<vmem>>, vector<8x8xf32>
    %c0_5 = arith.constant 0 : index
    %c0_6 = arith.constant 0 : index
    %4 = vector.load %arg4[%c0_5, %c0_6] : memref<8x32xf32, #tpu.memory_space<vmem>>, vector<8x32xf32>
    %cst_7 = arith.constant dense<0.000000e+00> : vector<8x32xf32>
    %5 = tpu.matmul %3, %4, %cst_7 {dimension_numbers = #tpu.dot_dimension_numbers<[1], [0], [0], [1], [0, 0, 1, 1], [], []>} : vector<8x8xf32>, vector<8x32xf32>, vector<8x32xf32> -> vector<8x32xf32>
    %6 = arith.addf %2, %5 : vector<8x32xf32>
    %c0_8 = arith.constant 0 : index
    %c0_9 = arith.constant 0 : index
    %7 = vector.load %arg5[%c0_8, %c0_9] : memref<1x32xf32, #tpu.memory_space<vmem>>, vector<1x32xf32>
    %8 = vector.broadcast %7 : vector<1x32xf32> to vector<8x32xf32>
    %9 = arith.addf %6, %8 : vector<8x32xf32>
    %cst_10 = arith.constant 0.000000e+00 : f32
    %10 = vector.broadcast %cst_10 : f32 to vector<8x32xf32>
    %11 = arith.maximumf %9, %10 : vector<8x32xf32>
    %c0_11 = arith.constant 0 : index
    %c0_12 = arith.constant 0 : index
    %12 = vector.load %arg6[%c0_11, %c0_12] : memref<32x32xf32, #tpu.memory_space<vmem>>, vector<32x32xf32>
    %cst_13 = arith.constant dense<0.000000e+00> : vector<8x32xf32>
    %13 = tpu.matmul %11, %12, %cst_13 {dimension_numbers = #tpu.dot_dimension_numbers<[1], [0], [0], [1], [0, 0, 1, 1], [], []>} : vector<8x32xf32>, vector<32x32xf32>, vector<8x32xf32> -> vector<8x32xf32>
    %c0_14 = arith.constant 0 : index
    %c0_15 = arith.constant 0 : index
    %14 = vector.load %arg7[%c0_14, %c0_15] : memref<1x32xf32, #tpu.memory_space<vmem>>, vector<1x32xf32>
    %15 = vector.broadcast %14 : vector<1x32xf32> to vector<8x32xf32>
    %16 = arith.addf %13, %15 : vector<8x32xf32>
    %cst_16 = arith.constant 0.000000e+00 : f32
    %17 = vector.broadcast %cst_16 : f32 to vector<8x32xf32>
    %18 = arith.maximumf %16, %17 : vector<8x32xf32>
    %c0_17 = arith.constant 0 : index
    %c0_18 = arith.constant 0 : index
    %19 = vector.load %arg8[%c0_17, %c0_18] : memref<32x1xf32, #tpu.memory_space<vmem>>, vector<32x1xf32>
    %cst_19 = arith.constant dense<0.000000e+00> : vector<8x1xf32>
    %20 = tpu.matmul %18, %19, %cst_19 {dimension_numbers = #tpu.dot_dimension_numbers<[1], [0], [0], [1], [0, 0, 1, 1], [], []>} : vector<8x32xf32>, vector<32x1xf32>, vector<8x1xf32> -> vector<8x1xf32>
    %c0_20 = arith.constant 0 : index
    %c0_21 = arith.constant 0 : index
    %21 = vector.load %arg9[%c0_20, %c0_21] : memref<1x1xf32, #tpu.memory_space<vmem>>, vector<1x1xf32>
    %22 = vector.broadcast %21 : vector<1x1xf32> to vector<8x1xf32>
    %23 = arith.addf %20, %22 : vector<8x1xf32>
    %c0_22 = arith.constant 0 : index
    %c0_23 = arith.constant 0 : index
    %24 = vector.load %arg10[%c0_22, %c0_23] : memref<8x1xf32, #tpu.memory_space<vmem>>, vector<8x1xf32>
    tpu.vector_store %arg10[%c0_22, %c0_23], %23 {strides = array<i32>} : memref<8x1xf32, #tpu.memory_space<vmem>>, vector<8x1xf32>,
    return
  }
  func.func @transform_0(%arg0: i32) -> (i32, i32) {
    %c0_i32 = arith.constant 0 : i32
    %c0_i32_0 = arith.constant 0 : i32
    return %arg0, %c0_i32 : i32, i32
  }
  func.func @transform_1(%arg0: i32) -> (i32, i32) {
    %c0_i32 = arith.constant 0 : i32
    %c0_i32_0 = arith.constant 0 : i32
    return %arg0, %c0_i32 : i32, i32
  }
  func.func @transform_2(%arg0: i32) -> (i32, i32) {
    %c0_i32 = arith.constant 0 : i32
    %c0_i32_0 = arith.constant 0 : i32
    %c0_i32_1 = arith.constant 0 : i32
    return %c0_i32, %c0_i32_0 : i32, i32
  }
  func.func @transform_3(%arg0: i32) -> (i32, i32) {
    %c0_i32 = arith.constant 0 : i32
    %c0_i32_0 = arith.constant 0 : i32
    %c0_i32_1 = arith.constant 0 : i32
    return %c0_i32, %c0_i32_0 : i32, i32
  }
  func.func @transform_4(%arg0: i32) -> (i32, i32) {
    %c0_i32 = arith.constant 0 : i32
    %c0_i32_0 = arith.constant 0 : i32
    %c0_i32_1 = arith.constant 0 : i32
    return %c0_i32, %c0_i32_0 : i32, i32
  }
  func.func @transform_5(%arg0: i32) -> (i32, i32) {
    %c0_i32 = arith.constant 0 : i32
    %c0_i32_0 = arith.constant 0 : i32
    %c0_i32_1 = arith.constant 0 : i32
    return %c0_i32, %c0_i32_0 : i32, i32
  }
  func.func @transform_6(%arg0: i32) -> (i32, i32) {
    %c0_i32 = arith.constant 0 : i32
    %c0_i32_0 = arith.constant 0 : i32
    %c0_i32_1 = arith.constant 0 : i32
    return %c0_i32, %c0_i32_0 : i32, i32
  }
  func.func @transform_7(%arg0: i32) -> (i32, i32) {
    %c0_i32 = arith.constant 0 : i32
    %c0_i32_0 = arith.constant 0 : i32
    %c0_i32_1 = arith.constant 0 : i32
    return %c0_i32, %c0_i32_0 : i32, i32
  }
  func.func @transform_8(%arg0: i32) -> (i32, i32) {
    %c0_i32 = arith.constant 0 : i32
    %c0_i32_0 = arith.constant 0 : i32
    %c0_i32_1 = arith.constant 0 : i32
    return %c0_i32, %c0_i32_0 : i32, i32
  }
  func.func @transform_9(%arg0: i32) -> (i32, i32) {
    %c0_i32 = arith.constant 0 : i32
    %c0_i32_0 = arith.constant 0 : i32
    return %arg0, %c0_i32 : i32, i32
  }
}

</mosaic_0001>

<llo_original>
// kernel: tpu_custom_call.1
$region0: #{tpu_custom_call.1}
  #allocation0 [shape = 'u32[]', space=smem, size = 0x4, offset = 0x4, fixed_abs, tag = 'smem constant byte address 0x4 - core index']
  #allocation1 [shape = 'u32[144,128]{1,0:T(1,128)}', space=vmem, size = 0x12000, scoped, tag = 'internal scratch']
  #allocation2 [shape = 'f32[1,1]{1,0:T(1,128)S(1)}', space=vmem, size = 0x200, scoped, tag = 'scoped memory for tpu_custom_call.1']
  %s0 = inlined_call_operand.vmem [shape: f32[24,24], index: 0, kind: input, shape index: {}]
  %s1 = inlined_call_operand.vmem [shape: f32[24,8], index: 1, kind: input, shape index: {}]
  %s2 = inlined_call_operand.hbm [shape: f32[24,32], index: 2, kind: input, shape index: {}]
  %s3 = inlined_call_operand.vmem [shape: f32[8,32], index: 3, kind: input, shape index: {}]
  %s4 = inlined_call_operand.vmem [shape: f32[1,32], index: 4, kind: input, shape index: {}]
  %s5 = inlined_call_operand.vmem [shape: f32[32,32], index: 5, kind: input, shape index: {}]
  %s6 = inlined_call_operand.vmem [shape: f32[1,32], index: 6, kind: input, shape index: {}]
  %s7 = inlined_call_operand.vmem [shape: f32[32,1], index: 7, kind: input, shape index: {}]
  %s8 = inlined_call_operand.<no memory space> [shape: f32[1,1], index: 8, kind: input, shape index: {}]
  %s9 = inlined_call_operand.vmem [shape: f32[24,1], index: 9, kind: output, shape index: {}]
  %s10 = sld [smem:[#allocation0]]
  $region73: #{tpu_custom_call.1} parent=0
    _
  %s12 = ssub.s32 1, %s10
  %s13 = scalar_select 0, %s12, %s10
  %v14 = vstv %s8
  %15 = vst [vmem:[#allocation2] sm:$0x1] %v14
  $region1: #{tpu_custom_call.1} parent=0
    #allocation3 [shape = 'u8[12288]{0}', space=vmem, size = 0x3000, scoped, tag = 'input window, operand 2, single buffered']
    #allocation4 [shape = 's32[2]{0}', space=sflag, size = 0x8, scoped, tag = 'scoped memory for tpu_custom_call.1']
    %16 = vsyncpa [#allocation4], 0
    loop: start=0, step=1, limit=5
    $region2: #{tpu_custom_call.1} parent=1 // loop_pre_header
      _
    $region3: #{tpu_custom_call.1} parent=1 // loop_header
      %s18 = sphi 0, %s22
      %p19 = scmp.ge.s32.totalorder %s18, 5
      %s28 = sphi 0, %s30
      %s31 = sphi 0, %s28
      %s32 = sphi 0, %s31
      %s48 = sphi 0, %s32
      %s54 = sphi 0, %s56
      %s57 = sphi 0, %s54
      %s58 = sphi 0, %s57
      %s74 = sphi 0, %s58
      %s78 = sphi 0, %s78
      %s80 = sphi 0, %s78
      %s81 = sphi 0, %s80
      %s95 = sphi 0, %s81
      %s99 = sphi 0, %s99
      %s101 = sphi 0, %s99
      %s102 = sphi 0, %s101
      %s116 = sphi 0, %s102
      %s120 = sphi 0, %s120
      %s122 = sphi 0, %s120
      %s123 = sphi 0, %s122
      %s137 = sphi 0, %s123
      %s141 = sphi 0, %s141
      %s143 = sphi 0, %s141
      %s144 = sphi 0, %s143
      %s158 = sphi 0, %s144
      %s162 = sphi 0, %s162
      %s164 = sphi 0, %s162
      %s165 = sphi 0, %s164
      %s179 = sphi 0, %s165
      %s183 = sphi 0, %s183
      %s185 = sphi 0, %s183
      %s186 = sphi 0, %s185
      %s200 = sphi 0, %s186
      %s204 = sphi 0, %s204
      %s206 = sphi 0, %s204
      %s207 = sphi 0, %s206
      %s221 = sphi 0, %s207
      %s227 = sphi 0, %s229
      %s230 = sphi 0, %s227
      %s231 = sphi 0, %s230
      %s247 = sphi 0, %s231
    $region4: #{tpu_custom_call.1} parent=1 // loop_header_branch
      %21 = sbr.rel (%p19) target = $region8
    $region5: #{tpu_custom_call.1} parent=1 // loop_body
      %s23 = ssub.s32 %s18, 1
      %s24 = ssub.s32 %s18, 2
      %s25 = sadd.s32 %s18, 1
      %s26 = ssub.s32 %s18, %s25
      %p27 = scmp.eq.s32.totalorder %s26, 0
      %s29 = sadd.s32 %s28, 1
      %s30 = scalar_select %p27, %s28, %s29
      %p33 = pneg %p27
      %p34 = scmp.eq.s32.totalorder %s18, 2
      %p35 = por %p33, %p34
      %p36 = scmp.ne.s32.totalorder %s28, %s31
      %p37 = scmp.eq.s32.totalorder %s18, 0
      %p38 = por %p36, %p37
      %p39 = scmp.ne.s32.totalorder %s28, %s31
      %p40 = scmp.eq.s32.totalorder %s23, 2
      %p41 = por %p39, %p40
      %p42 = scmp.ne.s32.totalorder %s31, %s32
      %p43 = scmp.eq.s32.totalorder %s23, 0
      %p44 = por %p42, %p43
      %p45 = scmp.ne.s32.totalorder %s31, %s32
      %p46 = scmp.eq.s32.totalorder %s24, 2
      %p47 = por %p45, %p46
      %p49 = scmp.ne.s32.totalorder %s32, %s48
      %p50 = scmp.eq.s32.totalorder %s24, 0
      %p51 = por %p49, %p50
      %s52 = ssub.s32 %s18, %s25
      %p53 = scmp.eq.s32.totalorder %s52, 0
      %s55 = sadd.s32 %s54, 1
      %s56 = scalar_select %p53, %s54, %s55
      %p59 = pneg %p53
      %p60 = scmp.eq.s32.totalorder %s18, 2
      %p61 = por %p59, %p60
      %p62 = scmp.ne.s32.totalorder %s54, %s57
      %p63 = scmp.eq.s32.totalorder %s18, 0
      %p64 = por %p62, %p63
      %p65 = scmp.ne.s32.totalorder %s54, %s57
      %p66 = scmp.eq.s32.totalorder %s23, 2
      %p67 = por %p65, %p66
      %p68 = scmp.ne.s32.totalorder %s57, %s58
      %p69 = scmp.eq.s32.totalorder %s23, 0
      %p70 = por %p68, %p69
      %p71 = scmp.ne.s32.totalorder %s57, %s58
      %p72 = scmp.eq.s32.totalorder %s24, 2
      %p73 = por %p71, %p72
      %p75 = scmp.ne.s32.totalorder %s58, %s74
      %p76 = scmp.eq.s32.totalorder %s24, 0
      %p77 = por %p75, %p76
      %s79 = sadd.s32 %s78, 1
      %p82 = scmp.eq.s32.totalorder %s18, 2
      %p83 = scmp.ne.s32.totalorder %s78, %s80
      %p84 = scmp.eq.s32.totalorder %s18, 0
      %p85 = por %p83, %p84
      %p86 = scmp.ne.s32.totalorder %s78, %s80
      %p87 = scmp.eq.s32.totalorder %s23, 2
      %p88 = por %p86, %p87
      %p89 = scmp.ne.s32.totalorder %s80, %s81
      %p90 = scmp.eq.s32.totalorder %s23, 0
      %p91 = por %p89, %p90
      %p92 = scmp.ne.s32.totalorder %s80, %s81
      %p93 = scmp.eq.s32.totalorder %s24, 2
      %p94 = por %p92, %p93
      %p96 = scmp.ne.s32.totalorder %s81, %s95
      %p97 = scmp.eq.s32.totalorder %s24, 0
      %p98 = por %p96, %p97
      %s100 = sadd.s32 %s99, 1
      %p103 = scmp.eq.s32.totalorder %s18, 2
      %p104 = scmp.ne.s32.totalorder %s99, %s101
      %p105 = scmp.eq.s32.totalorder %s18, 0
      %p106 = por %p104, %p105
      %p107 = scmp.ne.s32.totalorder %s99, %s101
      %p108 = scmp.eq.s32.totalorder %s23, 2
      %p109 = por %p107, %p108
      %p110 = scmp.ne.s32.totalorder %s101, %s102
      %p111 = scmp.eq.s32.totalorder %s23, 0
      %p112 = por %p110, %p111
      %p113 = scmp.ne.s32.totalorder %s101, %s102
      %p114 = scmp.eq.s32.totalorder %s24, 2
      %p115 = por %p113, %p114
      %p117 = scmp.ne.s32.totalorder %s102, %s116
      %p118 = scmp.eq.s32.totalorder %s24, 0
      %p119 = por %p117, %p118
      %s121 = sadd.s32 %s120, 1
      %p124 = scmp.eq.s32.totalorder %s18, 2
      %p125 = scmp.ne.s32.totalorder %s120, %s122
      %p126 = scmp.eq.s32.totalorder %s18, 0
      %p127 = por %p125, %p126
      %p128 = scmp.ne.s32.totalorder %s120, %s122
      %p129 = scmp.eq.s32.totalorder %s23, 2
      %p130 = por %p128, %p129
      %p131 = scmp.ne.s32.totalorder %s122, %s123
      %p132 = scmp.eq.s32.totalorder %s23, 0
      %p133 = por %p131, %p132
      %p134 = scmp.ne.s32.totalorder %s122, %s123
      %p135 = scmp.eq.s32.totalorder %s24, 2
      %p136 = por %p134, %p135
      %p138 = scmp.ne.s32.totalorder %s123, %s137
      %p139 = scmp.eq.s32.totalorder %s24, 0
      %p140 = por %p138, %p139
      %s142 = sadd.s32 %s141, 1
      %p145 = scmp.eq.s32.totalorder %s18, 2
      %p146 = scmp.ne.s32.totalorder %s141, %s143
      %p147 = scmp.eq.s32.totalorder %s18, 0
      %p148 = por %p146, %p147
      %p149 = scmp.ne.s32.totalorder %s141, %s143
      %p150 = scmp.eq.s32.totalorder %s23, 2
      %p151 = por %p149, %p150
      %p152 = scmp.ne.s32.totalorder %s143, %s144
      %p153 = scmp.eq.s32.totalorder %s23, 0
      %p154 = por %p152, %p153
      %p155 = scmp.ne.s32.totalorder %s143, %s144
      %p156 = scmp.eq.s32.totalorder %s24, 2
      %p157 = por %p155, %p156
      %p159 = scmp.ne.s32.totalorder %s144, %s158
      %p160 = scmp.eq.s32.totalorder %s24, 0
      %p161 = por %p159, %p160
      %s163 = sadd.s32 %s162, 1
      %p166 = scmp.eq.s32.totalorder %s18, 2
      %p167 = scmp.ne.s32.totalorder %s162, %s164
      %p168 = scmp.eq.s32.totalorder %s18, 0
      %p169 = por %p167, %p168
      %p170 = scmp.ne.s32.totalorder %s162, %s164
      %p171 = scmp.eq.s32.totalorder %s23, 2
      %p172 = por %p170, %p171
      %p173 = scmp.ne.s32.totalorder %s164, %s165
      %p174 = scmp.eq.s32.totalorder %s23, 0
      %p175 = por %p173, %p174
      %p176 = scmp.ne.s32.totalorder %s164, %s165
      %p177 = scmp.eq.s32.totalorder %s24, 2
      %p178 = por %p176, %p177
      %p180 = scmp.ne.s32.totalorder %s165, %s179
      %p181 = scmp.eq.s32.totalorder %s24, 0
      %p182 = por %p180, %p181
      %s184 = sadd.s32 %s183, 1
      %p187 = scmp.eq.s32.totalorder %s18, 2
      %p188 = scmp.ne.s32.totalorder %s183, %s185
      %p189 = scmp.eq.s32.totalorder %s18, 0
      %p190 = por %p188, %p189
      %p191 = scmp.ne.s32.totalorder %s183, %s185
      %p192 = scmp.eq.s32.totalorder %s23, 2
      %p193 = por %p191, %p192
      %p194 = scmp.ne.s32.totalorder %s185, %s186
      %p195 = scmp.eq.s32.totalorder %s23, 0
      %p196 = por %p194, %p195
      %p197 = scmp.ne.s32.totalorder %s185, %s186
      %p198 = scmp.eq.s32.totalorder %s24, 2
      %p199 = por %p197, %p198
      %p201 = scmp.ne.s32.totalorder %s186, %s200
      %p202 = scmp.eq.s32.totalorder %s24, 0
      %p203 = por %p201, %p202
      %s205 = sadd.s32 %s204, 1
      %p208 = scmp.eq.s32.totalorder %s18, 2
      %p209 = scmp.ne.s32.totalorder %s204, %s206
      %p210 = scmp.eq.s32.totalorder %s18, 0
      %p211 = por %p209, %p210
      %p212 = scmp.ne.s32.totalorder %s204, %s206
      %p213 = scmp.eq.s32.totalorder %s23, 2
      %p214 = por %p212, %p213
      %p215 = scmp.ne.s32.totalorder %s206, %s207
      %p216 = scmp.eq.s32.totalorder %s23, 0
      %p217 = por %p215, %p216
      %p218 = scmp.ne.s32.totalorder %s206, %s207
      %p219 = scmp.eq.s32.totalorder %s24, 2
      %p220 = por %p218, %p219
      %p222 = scmp.ne.s32.totalorder %s207, %s221
      %p223 = scmp.eq.s32.totalorder %s24, 0
      %p224 = por %p222, %p223
      %s225 = ssub.s32 %s18, %s25
      %p226 = scmp.eq.s32.totalorder %s225, 0
      %s228 = sadd.s32 %s227, 1
      %s229 = scalar_select %p226, %s227, %s228
      %p232 = pneg %p226
      %p233 = scmp.eq.s32.totalorder %s18, 2
      %p234 = por %p232, %p233
      %p235 = scmp.ne.s32.totalorder %s227, %s230
      %p236 = scmp.eq.s32.totalorder %s18, 0
      %p237 = por %p235, %p236
      %p238 = scmp.ne.s32.totalorder %s227, %s230
      %p239 = scmp.eq.s32.totalorder %s23, 2
      %p240 = por %p238, %p239
      %p241 = scmp.ne.s32.totalorder %s230, %s231
      %p242 = scmp.eq.s32.totalorder %s23, 0
      %p243 = por %p241, %p242
      %p244 = scmp.ne.s32.totalorder %s230, %s231
      %p245 = scmp.eq.s32.totalorder %s24, 2
      %p246 = por %p244, %p245
      %p248 = scmp.ne.s32.totalorder %s231, %s247
      %p249 = scmp.eq.s32.totalorder %s24, 0
      %p250 = por %p248, %p249
      %p251 = scmp.le.s32.totalorder 1, %s18
      %p252 = scmp.lt.s32.totalorder %s18, 4
      %p253 = pnand %p251, %p252
      %p254 = pneg %p253
      // Predicated region
      $region9: #{tpu_custom_call.1} parent=5 // pred_check
        _
      $region10: #{tpu_custom_call.1} parent=5 // pred_check_branch
        %256 = sbr.rel (%p253) target = $region12
      $region11: #{tpu_custom_call.1} parent=5 // pred_region
        %s257 = ssub.s32 %s18, 1
        // Predicated region
        $region13: #{tpu_custom_call.1} parent=11 // pred_check
          %p258 = pneg %p91
        $region14: #{tpu_custom_call.1} parent=11 // pred_check_branch
          %260 = sbr.rel (%p258) target = $region16
        $region15: #{tpu_custom_call.1} parent=11 // pred_region
          %s262 = ssub.s32 384, 384
          %263 = vsyncadd [#allocation4], %s262
          %s264 = sshll.u32 [#allocation3], 4
          %s265 = int_to_ptr.vmem [resolvable:$true] %s264
          %270 = dma.hbm_to_vmem [thread:$0]  %s2, 384, %s265, [#allocation4], 128, 128, 8
        $region16: #{tpu_custom_call.1} parent=11 // pred_fallthru
          _
        // Predicated region
        $region17: #{tpu_custom_call.1} parent=11 // pred_check
          %p271 = pneg %p112
        $region18: #{tpu_custom_call.1} parent=11 // pred_check_branch
          %273 = sbr.rel (%p271) target = $region20
        $region19: #{tpu_custom_call.1} parent=11 // pred_region
          _
        $region20: #{tpu_custom_call.1} parent=11 // pred_fallthru
          _
        // Predicated region
        $region21: #{tpu_custom_call.1} parent=11 // pred_check
          %p274 = pneg %p133
        $region22: #{tpu_custom_call.1} parent=11 // pred_check_branch
          %276 = sbr.rel (%p274) target = $region24
        $region23: #{tpu_custom_call.1} parent=11 // pred_region
          _
        $region24: #{tpu_custom_call.1} parent=11 // pred_fallthru
          _
        // Predicated region
        $region25: #{tpu_custom_call.1} parent=11 // pred_check
          %p277 = pneg %p154
        $region26: #{tpu_custom_call.1} parent=11 // pred_check_branch
          %279 = sbr.rel (%p277) target = $region28
        $region27: #{tpu_custom_call.1} parent=11 // pred_region
          _
        $region28: #{tpu_custom_call.1} parent=11 // pred_fallthru
          _
        // Predicated region
        $region29: #{tpu_custom_call.1} parent=11 // pred_check
          %p280 = pneg %p175
        $region30: #{tpu_custom_call.1} parent=11 // pred_check_branch
          %282 = sbr.rel (%p280) target = $region32
        $region31: #{tpu_custom_call.1} parent=11 // pred_region
          _
        $region32: #{tpu_custom_call.1} parent=11 // pred_fallthru
          _
        // Predicated region
        $region33: #{tpu_custom_call.1} parent=11 // pred_check
          %p283 = pneg %p196
        $region34: #{tpu_custom_call.1} parent=11 // pred_check_branch
          %285 = sbr.rel (%p283) target = $region36
        $region35: #{tpu_custom_call.1} parent=11 // pred_region
          _
        $region36: #{tpu_custom_call.1} parent=11 // pred_fallthru
          _
        // Predicated region
        $region37: #{tpu_custom_call.1} parent=11 // pred_check
          %p286 = pneg %p217
        $region38: #{tpu_custom_call.1} parent=11 // pred_check_branch
          %288 = sbr.rel (%p286) target = $region40
        $region39: #{tpu_custom_call.1} parent=11 // pred_region
          _
        $region40: #{tpu_custom_call.1} parent=11 // pred_fallthru
          _
      $region12: #{tpu_custom_call.1} parent=5 // pred_fallthru
        _
      %p289 = scmp.lt.s32.totalorder %s18, 3
      // Predicated region
      $region41: #{tpu_custom_call.1} parent=5 // pred_check
        %p290 = pneg %p289
      $region42: #{tpu_custom_call.1} parent=5 // pred_check_branch
        %292 = sbr.rel (%p290) target = $region44
      $region43: #{tpu_custom_call.1} parent=5 // pred_region
        // Predicated region
        $region45: #{tpu_custom_call.1} parent=43 // pred_check
          %p293 = pneg %p38
        $region46: #{tpu_custom_call.1} parent=43 // pred_check_branch
          %295 = sbr.rel (%p293) target = $region48
        $region47: #{tpu_custom_call.1} parent=43 // pred_region
          %p296 = scmp.lt.s32.totalorder %s18, 2
          %s297 = scalar_select %p296, %s18, 2
          %s298 = smul.addr %s297, 8
          %s299 = scalar_lea.vmem %s0, %s298
        $region48: #{tpu_custom_call.1} parent=43 // pred_fallthru
          _
        // Predicated region
        $region49: #{tpu_custom_call.1} parent=43 // pred_check
          %p300 = pneg %p64
        $region50: #{tpu_custom_call.1} parent=43 // pred_check_branch
          %302 = sbr.rel (%p300) target = $region52
        $region51: #{tpu_custom_call.1} parent=43 // pred_region
          %p303 = scmp.lt.s32.totalorder %s18, 2
          %s304 = scalar_select %p303, %s18, 2
          %s305 = smul.addr %s304, 8
          %s306 = scalar_lea.vmem %s1, %s305
        $region52: #{tpu_custom_call.1} parent=43 // pred_fallthru
          _
      $region44: #{tpu_custom_call.1} parent=5 // pred_fallthru
        _
      %p307 = scmp.le.s32.totalorder 1, %s18
      %p308 = scmp.lt.s32.totalorder %s18, 4
      %p309 = pnand %p307, %p308
      %p310 = pneg %p309
      // Predicated region
      $region53: #{tpu_custom_call.1} parent=5 // pred_check
        _
      $region54: #{tpu_custom_call.1} parent=5 // pred_check_branch
        %312 = sbr.rel (%p309) target = $region56
      $region55: #{tpu_custom_call.1} parent=5 // pred_region
        %s313 = ssub.s32 %s18, 1
        // Predicated region
        $region57: #{tpu_custom_call.1} parent=55 // pred_check
          %p314 = pneg %p91
        $region58: #{tpu_custom_call.1} parent=55 // pred_check_branch
          %316 = sbr.rel (%p314) target = $region60
        $region59: #{tpu_custom_call.1} parent=55 // pred_region
          %317 = dma.done [#allocation4], 384
        $region60: #{tpu_custom_call.1} parent=55 // pred_fallthru
          _
        %p318 = scmp.lt.s32.totalorder %s23, 2
        %s319 = scalar_select %p318, %s23, 2
        %s320 = smul.addr %s319, 8
        %s321 = scalar_lea.vmem %s0, %s320
        %p322 = pneg %p44
        %p323 = pneg %p41
        %p324 = scmp.lt.s32.totalorder %s23, 2
        %s325 = scalar_select %p324, %s23, 2
        %s326 = smul.addr %s325, 8
        %s327 = scalar_lea.vmem %s1, %s326
        %p328 = pneg %p70
        %p329 = pneg %p67
        %p330 = pneg %p91
        %p331 = pneg %p88
        %p332 = pneg %p112
        %p333 = pneg %p109
        %p334 = pneg %p133
        %p335 = pneg %p130
        %p336 = pneg %p154
        %p337 = pneg %p151
        %p338 = pneg %p175
        %p339 = pneg %p172
        %p340 = pneg %p196
        %p341 = pneg %p193
        %p342 = pneg %p217
        %p343 = pneg %p214
        %p344 = pneg %p243
        %p345 = pneg %p240
        %p346 = scmp.lt.s32.totalorder %s23, 2
        %s347 = scalar_select %p346, %s23, 2
        %s348 = smul.addr %s347, 8
        %s349 = scalar_lea.vmem %s9, %s348
        %p350 = scmp.lt.s32.totalorder %s23, 2
        %s351 = scalar_select %p350, %s23, 2
        %s352 = smul.addr %s351, 8
        %s353 = scalar_lea.vmem %s0, %s352
        %p354 = scmp.lt.s32.totalorder %s23, 2
        %s355 = scalar_select %p354, %s23, 2
        %s356 = smul.addr %s355, 8
        %s357 = scalar_lea.vmem %s1, %s356
        %p358 = scmp.lt.s32.totalorder %s23, 2
        %s359 = scalar_select %p358, %s23, 2
        %s360 = smul.addr %s359, 8
        %s361 = scalar_lea.vmem %s9, %s360
        %v362 = vld [vmem:[%s353] sm:$0xff]
        %v363 = vld [vmem:[#allocation3] sm:$0xff]
        %v364 = vld [vmem:[#allocation3 + $0x8] sm:$0xff]
        %v365 = vld [vmem:[#allocation3 + $0x10] sm:$0xff]
        %v366 = vld [vmem:[%s357] sm:$0xff]
        %v367 = vld [vmem:[%s3] sm:$0xff]
        %vm368 = vcmask 64512
        %v370 = vsel %vm368, %v366, 0
        %372 = vmatprep.subr.mxu0 0.0
        %373 = vmatpush1.msra.mxu0 0.0
        %374 = vmatprep.subr.mxu0 0.0
        %375 = vmatpush1.msra.mxu0 0.0
        %376 = vmatprep.subr.mxu0 0.0
        %377 = vmatpush1.msra.mxu0 0.0
        %378 = vmatprep.subr.mxu0 0.0
        %379 = vmatpush1.msra.mxu0 0.0
        %380 = vmatprep.subr.mxu0 0.0
        %381 = vmatpush1.msra.mxu0 0.0
        %382 = vmatprep.subr.mxu0 0.0
        %383 = vmatpush1.msra.mxu0 0.0
        %384 = vmatprep.subr.mxu0 0.0
        %385 = vmatpush1.msra.mxu0 0.0
        %386 = vmatprep.subr.mxu0 0.0
        %387 = vmatpush1.msra.mxu0 0.0
        %388 = vmatprep.subr.mxu0 0.0
        %389 = vmatpush1.msra.mxu0 0.0
        %390 = vmatprep.subr.mxu0 0.0
        %391 = vmatpush1.msra.mxu0 0.0
        %392 = vmatprep.subr.mxu0 0.0
        %393 = vmatpush1.msra.mxu0 0.0
        %394 = vmatprep.subr.mxu0 0.0
        %395 = vmatpush1.msra.mxu0 0.0
        %396 = vmatprep.subr.mxu0 0.0
        %397 = vmatpush1.msra.mxu0 0.0
        %398 = vmatprep.subr.mxu0 0.0
        %399 = vmatpush1.msra.mxu0 0.0
        %400 = vmatprep.subr.mxu0 0.0
        %401 = vmatpush1.msra.mxu0 0.0
        %402 = vmatprep.subr.mxu0 0.0
        %403 = vmatpush1.msra.mxu0 %v367
        %404 = vmatprep.subr.mxu0 0.0
        %405 = vmatpush2.msra.mxu0 0.0
        %406 = vmatprep.subr.mxu0 0.0
        %407 = vmatpush2.msra.mxu0 0.0
        %408 = vmatprep.subr.mxu0 0.0
        %409 = vmatpush2.msra.mxu0 0.0
        %410 = vmatprep.subr.mxu0 0.0
        %411 = vmatpush2.msra.mxu0 0.0
        %412 = vmatprep.subr.mxu0 0.0
        %413 = vmatpush2.msra.mxu0 0.0
        %414 = vmatprep.subr.mxu0 0.0
        %415 = vmatpush2.msra.mxu0 0.0
        %416 = vmatprep.subr.mxu0 0.0
        %417 = vmatpush2.msra.mxu0 0.0
        %418 = vmatprep.subr.mxu0 0.0
        %419 = vmatpush2.msra.mxu0 0.0
        %420 = vmatprep.subr.mxu0 0.0
        %421 = vmatpush2.msra.mxu0 0.0
        %422 = vmatprep.subr.mxu0 0.0
        %423 = vmatpush2.msra.mxu0 0.0
        %424 = vmatprep.subr.mxu0 0.0
        %425 = vmatpush2.msra.mxu0 0.0
        %426 = vmatprep.subr.mxu0 0.0
        %427 = vmatpush2.msra.mxu0 0.0
        %428 = vmatprep.subr.mxu0 0.0
        %429 = vmatpush2.msra.mxu0 0.0
        %430 = vmatprep.subr.mxu0 0.0
        %431 = vmatpush2.msra.mxu0 0.0
        %432 = vmatprep.subr.mxu0 0.0
        %433 = vmatpush2.msra.mxu0 0.0
        %434 = vmatprep.subr.mxu0 0.0
        %435 = vmatpush2.msra.mxu0 0.0
        %436 = vmatprep.mubr.f32.mxu0 0.0
        %437 = vmatmul.mubr.f32.gmra.mxu0 %v370
        %v438 = vpop.f32.mrf.mxu0
        %v439 = vadd.f32 0.0, %v438
        %v440 = vpop.f32.mrf.mxu0
        %441 = vdwg.mxu0
        %vm442 = vcmask 195584
        %v444 = vsel %vm442, %v362, 0
        %446 = vmatprep.subr.mxu0 0.0
        %447 = vmatpush1.msra.mxu0 0.0
        %448 = vmatprep.subr.mxu0 0.0
        %449 = vmatpush1.msra.mxu0 0.0
        %450 = vmatprep.subr.mxu0 0.0
        %451 = vmatpush1.msra.mxu0 0.0
        %452 = vmatprep.subr.mxu0 0.0
        %453 = vmatpush1.msra.mxu0 0.0
        %454 = vmatprep.subr.mxu0 0.0
        %455 = vmatpush1.msra.mxu0 0.0
        %456 = vmatprep.subr.mxu0 0.0
        %457 = vmatpush1.msra.mxu0 0.0
        %458 = vmatprep.subr.mxu0 0.0
        %459 = vmatpush1.msra.mxu0 0.0
        %460 = vmatprep.subr.mxu0 0.0
        %461 = vmatpush1.msra.mxu0 0.0
        %462 = vmatprep.subr.mxu0 0.0
        %463 = vmatpush1.msra.mxu0 0.0
        %464 = vmatprep.subr.mxu0 0.0
        %465 = vmatpush1.msra.mxu0 0.0
        %466 = vmatprep.subr.mxu0 0.0
        %467 = vmatpush1.msra.mxu0 0.0
        %468 = vmatprep.subr.mxu0 0.0
        %469 = vmatpush1.msra.mxu0 0.0
        %470 = vmatprep.subr.mxu0 0.0
        %471 = vmatpush1.msra.mxu0 0.0
        %472 = vmatprep.subr.mxu0 0.0
        %473 = vmatpush1.msra.mxu0 %v365
        %474 = vmatprep.subr.mxu0 0.0
        %475 = vmatpush1.msra.mxu0 %v364
        %476 = vmatprep.subr.mxu0 0.0
        %477 = vmatpush1.msra.mxu0 %v363
        %478 = vmatprep.subr.mxu0 0.0
        %479 = vmatpush2.msra.mxu0 0.0
        %480 = vmatprep.subr.mxu0 0.0
        %481 = vmatpush2.msra.mxu0 0.0
        %482 = vmatprep.subr.mxu0 0.0
        %483 = vmatpush2.msra.mxu0 0.0
        %484 = vmatprep.subr.mxu0 0.0
        %485 = vmatpush2.msra.mxu0 0.0
        %486 = vmatprep.subr.mxu0 0.0
        %487 = vmatpush2.msra.mxu0 0.0
        %488 = vmatprep.subr.mxu0 0.0
        %489 = vmatpush2.msra.mxu0 0.0
        %490 = vmatprep.subr.mxu0 0.0
        %491 = vmatpush2.msra.mxu0 0.0
        %492 = vmatprep.subr.mxu0 0.0
        %493 = vmatpush2.msra.mxu0 0.0
        %494 = vmatprep.subr.mxu0 0.0
        %495 = vmatpush2.msra.mxu0 0.0
        %496 = vmatprep.subr.mxu0 0.0
        %497 = vmatpush2.msra.mxu0 0.0
        %498 = vmatprep.subr.mxu0 0.0
        %499 = vmatpush2.msra.mxu0 0.0
        %500 = vmatprep.subr.mxu0 0.0
        %501 = vmatpush2.msra.mxu0 0.0
        %502 = vmatprep.subr.mxu0 0.0
        %503 = vmatpush2.msra.mxu0 0.0
        %504 = vmatprep.subr.mxu0 0.0
        %505 = vmatpush2.msra.mxu0 0.0
        %506 = vmatprep.subr.mxu0 0.0
        %507 = vmatpush2.msra.mxu0 0.0
        %508 = vmatprep.subr.mxu0 0.0
        %509 = vmatpush2.msra.mxu0 0.0
        %510 = vmatprep.mubr.f32.mxu0 0.0
        %511 = vmatmul.mubr.f32.gmra.mxu0 %v444
        %v512 = vpop.f32.mrf.mxu0
        %v513 = vadd.f32 %v439, %v512
        %v514 = vpop.f32.mrf.mxu0
        %515 = vdwg.mxu0
        %v516 = vld [vmem:[%s4] sm:$0x1]
        %v518 = vlaneseq
        %v519 = vshrl.u32 %v518, 7
        %v520 = vsub.s32 0, %v519
        %v521 = vrot.slane %v516, %v520
        %v523 = vadd.f32 %v513, %v521
        %v524 = vmax.f32 %v523, 0.0
        %v525 = vld [vmem:[%s5] sm:$0xff]
        %v526 = vld [vmem:[%s5 + $0x8] sm:$0xff]
        %v527 = vld [vmem:[%s5 + $0x10] sm:$0xff]
        %v528 = vld [vmem:[%s5 + $0x18] sm:$0xff]
        %v529 = vld [vmem:[%s6] sm:$0x1]
        %v531 = vlaneseq
        %v532 = vshrl.u32 %v531, 7
        %v533 = vsub.s32 0, %v532
        %v534 = vrot.slane %v529, %v533
        %vm536 = vcmask 261120
        %v538 = vsel %vm536, %v524, 0
        %540 = vmatprep.subr.mxu0 0.0
        %541 = vmatpush1.msra.mxu0 0.0
        %542 = vmatprep.subr.mxu0 0.0
        %543 = vmatpush1.msra.mxu0 0.0
        %544 = vmatprep.subr.mxu0 0.0
        %545 = vmatpush1.msra.mxu0 0.0
        %546 = vmatprep.subr.mxu0 0.0
        %547 = vmatpush1.msra.mxu0 0.0
        %548 = vmatprep.subr.mxu0 0.0
        %549 = vmatpush1.msra.mxu0 0.0
        %550 = vmatprep.subr.mxu0 0.0
        %551 = vmatpush1.msra.mxu0 0.0
        %552 = vmatprep.subr.mxu0 0.0
        %553 = vmatpush1.msra.mxu0 0.0
        %554 = vmatprep.subr.mxu0 0.0
        %555 = vmatpush1.msra.mxu0 0.0
        %556 = vmatprep.subr.mxu0 0.0
        %557 = vmatpush1.msra.mxu0 0.0
        %558 = vmatprep.subr.mxu0 0.0
        %559 = vmatpush1.msra.mxu0 0.0
        %560 = vmatprep.subr.mxu0 0.0
        %561 = vmatpush1.msra.mxu0 0.0
        %562 = vmatprep.subr.mxu0 0.0
        %563 = vmatpush1.msra.mxu0 0.0
        %564 = vmatprep.subr.mxu0 0.0
        %565 = vmatpush1.msra.mxu0 %v528
        %566 = vmatprep.subr.mxu0 0.0
        %567 = vmatpush1.msra.mxu0 %v527
        %568 = vmatprep.subr.mxu0 0.0
        %569 = vmatpush1.msra.mxu0 %v526
        %570 = vmatprep.subr.mxu0 0.0
        %571 = vmatpush1.msra.mxu0 %v525
        %572 = vmatprep.subr.mxu0 0.0
        %573 = vmatpush2.msra.mxu0 0.0
        %574 = vmatprep.subr.mxu0 0.0
        %575 = vmatpush2.msra.mxu0 0.0
        %576 = vmatprep.subr.mxu0 0.0
        %577 = vmatpush2.msra.mxu0 0.0
        %578 = vmatprep.subr.mxu0 0.0
        %579 = vmatpush2.msra.mxu0 0.0
        %580 = vmatprep.subr.mxu0 0.0
        %581 = vmatpush2.msra.mxu0 0.0
        %582 = vmatprep.subr.mxu0 0.0
        %583 = vmatpush2.msra.mxu0 0.0
        %584 = vmatprep.subr.mxu0 0.0
        %585 = vmatpush2.msra.mxu0 0.0
        %586 = vmatprep.subr.mxu0 0.0
        %587 = vmatpush2.msra.mxu0 0.0
        %588 = vmatprep.subr.mxu0 0.0
        %589 = vmatpush2.msra.mxu0 0.0
        %590 = vmatprep.subr.mxu0 0.0
        %591 = vmatpush2.msra.mxu0 0.0
        %592 = vmatprep.subr.mxu0 0.0
        %593 = vmatpush2.msra.mxu0 0.0
        %594 = vmatprep.subr.mxu0 0.0
        %595 = vmatpush2.msra.mxu0 0.0
        %596 = vmatprep.subr.mxu0 0.0
        %597 = vmatpush2.msra.mxu0 0.0
        %598 = vmatprep.subr.mxu0 0.0
        %599 = vmatpush2.msra.mxu0 0.0
        %600 = vmatprep.subr.mxu0 0.0
        %601 = vmatpush2.msra.mxu0 0.0
        %602 = vmatprep.subr.mxu0 0.0
        %603 = vmatpush2.msra.mxu0 0.0
        %604 = vmatprep.mubr.f32.mxu0 0.0
        %605 = vmatmul.mubr.f32.gmra.mxu0 %v538
        %v606 = vpop.f32.mrf.mxu0
        %v607 = vadd.f32 %v534, %v606
        %v608 = vpop.f32.mrf.mxu0
        %609 = vdwg.mxu0
        %v610 = vmax.f32 %v607, 0.0
        %v611 = vld [vmem:[%s7] sm:$0xff]
        %v612 = vld [vmem:[%s7 + $0x8] sm:$0xff]
        %v613 = vld [vmem:[%s7 + $0x10] sm:$0xff]
        %v614 = vld [vmem:[%s7 + $0x18] sm:$0xff]
        %v615 = vld [vmem:[#allocation2] sm:$0x1]
        %v617 = vlaneseq
        %v618 = vshrl.u32 %v617, 7
        %v619 = vsub.s32 0, %v618
        %v620 = vrot.slane %v615, %v619
        %v623 = vsel %vm536, %v610, 0
        %625 = vmatprep.subr.mxu0 0.0
        %626 = vmatpush1.msra.mxu0 0.0
        %627 = vmatprep.subr.mxu0 0.0
        %628 = vmatpush1.msra.mxu0 0.0
        %629 = vmatprep.subr.mxu0 0.0
        %630 = vmatpush1.msra.mxu0 0.0
        %631 = vmatprep.subr.mxu0 0.0
        %632 = vmatpush1.msra.mxu0 0.0
        %633 = vmatprep.subr.mxu0 0.0
        %634 = vmatpush1.msra.mxu0 0.0
        %635 = vmatprep.subr.mxu0 0.0
        %636 = vmatpush1.msra.mxu0 0.0
        %637 = vmatprep.subr.mxu0 0.0
        %638 = vmatpush1.msra.mxu0 0.0
        %639 = vmatprep.subr.mxu0 0.0
        %640 = vmatpush1.msra.mxu0 0.0
        %641 = vmatprep.subr.mxu0 0.0
        %642 = vmatpush1.msra.mxu0 0.0
        %643 = vmatprep.subr.mxu0 0.0
        %644 = vmatpush1.msra.mxu0 0.0
        %645 = vmatprep.subr.mxu0 0.0
        %646 = vmatpush1.msra.mxu0 0.0
        %647 = vmatprep.subr.mxu0 0.0
        %648 = vmatpush1.msra.mxu0 0.0
        %649 = vmatprep.subr.mxu0 0.0
        %650 = vmatpush1.msra.mxu0 %v614
        %651 = vmatprep.subr.mxu0 0.0
        %652 = vmatpush1.msra.mxu0 %v613
        %653 = vmatprep.subr.mxu0 0.0
        %654 = vmatpush1.msra.mxu0 %v612
        %655 = vmatprep.subr.mxu0 0.0
        %656 = vmatpush1.msra.mxu0 %v611
        %657 = vmatprep.subr.mxu0 0.0
        %658 = vmatpush2.msra.mxu0 0.0
        %659 = vmatprep.subr.mxu0 0.0
        %660 = vmatpush2.msra.mxu0 0.0
        %661 = vmatprep.subr.mxu0 0.0
        %662 = vmatpush2.msra.mxu0 0.0
        %663 = vmatprep.subr.mxu0 0.0
        %664 = vmatpush2.msra.mxu0 0.0
        %665 = vmatprep.subr.mxu0 0.0
        %666 = vmatpush2.msra.mxu0 0.0
        %667 = vmatprep.subr.mxu0 0.0
        %668 = vmatpush2.msra.mxu0 0.0
        %669 = vmatprep.subr.mxu0 0.0
        %670 = vmatpush2.msra.mxu0 0.0
        %671 = vmatprep.subr.mxu0 0.0
        %672 = vmatpush2.msra.mxu0 0.0
        %673 = vmatprep.subr.mxu0 0.0
        %674 = vmatpush2.msra.mxu0 0.0
        %675 = vmatprep.subr.mxu0 0.0
        %676 = vmatpush2.msra.mxu0 0.0
        %677 = vmatprep.subr.mxu0 0.0
        %678 = vmatpush2.msra.mxu0 0.0
        %679 = vmatprep.subr.mxu0 0.0
        %680 = vmatpush2.msra.mxu0 0.0
        %681 = vmatprep.subr.mxu0 0.0
        %682 = vmatpush2.msra.mxu0 0.0
        %683 = vmatprep.subr.mxu0 0.0
        %684 = vmatpush2.msra.mxu0 0.0
        %685 = vmatprep.subr.mxu0 0.0
        %686 = vmatpush2.msra.mxu0 0.0
        %687 = vmatprep.subr.mxu0 0.0
        %688 = vmatpush2.msra.mxu0 0.0
        %689 = vmatprep.mubr.f32.mxu0 0.0
        %690 = vmatmul.mubr.f32.gmra.mxu0 %v623
        %v691 = vpop.f32.mrf.mxu0
        %v692 = vadd.f32 %v620, %v691
        %v693 = vpop.f32.mrf.mxu0
        %694 = vdwg.mxu0
        %vm695 = vcmask 7168
        %696 = vst.msk [vmem:[%s361] sm:$0xff] %vm695, %v692
        %p697 = scmp.lt.s32.totalorder %s23, 2
        %s698 = scalar_select %p697, %s23, 2
        %s699 = smul.addr %s698, 8
        %s700 = scalar_lea.vmem %s9, %s699
        // Predicated region
        $region61: #{tpu_custom_call.1} parent=55 // pred_check
          %p701 = pneg %p240
        $region62: #{tpu_custom_call.1} parent=55 // pred_check_branch
          %703 = sbr.rel (%p701) target = $region64
        $region63: #{tpu_custom_call.1} parent=55 // pred_region
          _
        $region64: #{tpu_custom_call.1} parent=55 // pred_fallthru
          _
      $region56: #{tpu_custom_call.1} parent=5 // pred_fallthru
        _
      %p704 = scmp.le.s32.totalorder 2, %s18
      // Predicated region
      $region65: #{tpu_custom_call.1} parent=5 // pred_check
        %p705 = pneg %p704
      $region66: #{tpu_custom_call.1} parent=5 // pred_check_branch
        %707 = sbr.rel (%p705) target = $region68
      $region67: #{tpu_custom_call.1} parent=5 // pred_region
        %s708 = ssub.s32 %s18, 2
        // Predicated region
        $region69: #{tpu_custom_call.1} parent=67 // pred_check
          %p709 = pneg %p246
        $region70: #{tpu_custom_call.1} parent=67 // pred_check_branch
          %711 = sbr.rel (%p709) target = $region72
        $region71: #{tpu_custom_call.1} parent=67 // pred_region
          %p712 = scmp.lt.s32.totalorder %s24, 2
          %s713 = scalar_select %p712, %s24, 2
          %s714 = smul.addr %s713, 8
          %s715 = scalar_lea.vmem %s9, %s714
        $region72: #{tpu_custom_call.1} parent=67 // pred_fallthru
          _
      $region68: #{tpu_custom_call.1} parent=5 // pred_fallthru
        _
    $region6: #{tpu_custom_call.1} parent=1 // loop_footer
      %s22 = sadd.s32 1, %s18
    $region7: #{tpu_custom_call.1} parent=1 // loop_footer_branch
      %17 = sbr.rel target = $region3
    $region8: #{tpu_custom_call.1} parent=1 // loop_exit
      _
    %716 = vsyncpa [#allocation4], 1
    %s717 = scalar_lea.sflag [#allocation4], 1
    %718 = vsyncpa %s717, 1

</llo_original>
